<compile_context>
chip_gen: v7x
topology: tpu7x:2x2x1
jax: 0.10.0
libtpu: 0.0.40
codegen_flags: <defaults>
</compile_context>

<pallas_src>
import functools

import jax
import jax.numpy as jnp
from jax.experimental import pallas as pl
from jax.experimental.pallas import tpu as pltpu


_TINY_OUTPUT_BYTES = 4 * 1024  # below this, XLA's fused repeat is faster


def _repeat_rows_kernel(x_ref, o_ref, *, repeats, inner):
    # x_ref: (R, inner)            -- one block of flattened input rows
    # o_ref: (R, repeats * inner)  -- out[:, r*inner:(r+1)*inner] = x for all r
    x = x_ref[...]
    if repeats == 1:
        o_ref[...] = x
    else:
        # Unrolled per-replica stores with static slices: each replica is a
        # plain copy into the output tile; no repeats*inner-wide temporary.
        for r in range(repeats):
            o_ref[:, r * inner:(r + 1) * inner] = x


def _copy_kernel(x_ref, o_ref):
    # Pure copy; replication is expressed entirely through the out BlockSpec.
    o_ref[...] = x_ref[...]


def _chip_budgets():
    """Return (per-step working-set budget, vmem_limit_bytes) per TPU gen."""
    budget, limit = 8 << 20, 32 << 20           # safe on every gen / unknown
    try:
        vmem = getattr(pltpu.get_tpu_info(), "vmem_capacity_bytes", None)
    except Exception:
        vmem = None
    if vmem is not None:
        if vmem >= (96 << 20):                  # v5e / v6e: 128 MiB VMEM
            budget, limit = 24 << 20, 64 << 20
        else:                                   # v7x-like: 64 MiB VMEM / core
            budget, limit = 14 << 20, 40 << 20
    return budget, limit


def _round_down(v, m):
    return (v // m) * m


def _round_up(v, m):
    return -(-v // m) * m


def repeat_interleave_int(x: jax.Array, repeats: int, dim: int) -> jax.Array:
    """Equivalent of torch.Tensor.repeat_interleave(repeats, dim)."""
    ndim = x.ndim
    if dim < 0:
        dim += ndim
    assert 0 <= dim < ndim, "dim out of range"
    assert repeats >= 1

    shape = x.shape
    out_shape = shape[:dim] + (shape[dim] * repeats,) + shape[dim + 1:]

    outer = 1
    for s in shape[:dim]:
        outer *= s
    n = shape[dim]
    inner = 1
    for s in shape[dim + 1:]:
        inner *= s

    M = outer * n
    itemsize = jnp.dtype(x.dtype).itemsize
    out_bytes = M * repeats * inner * itemsize

    # Tiny / degenerate inputs: pallas_call launch + DMA-setup overhead
    # dominates; XLA's fused repeat is faster there.
    if x.size == 0 or out_bytes < _TINY_OUTPUT_BYTES:
        return jnp.repeat(x, repeats, axis=dim)

    x2 = x.reshape(M, inner)
    budget, vmem_limit = _chip_budgets()
    sub = max(8, 32 // itemsize)                # dense sublane rows per dtype

    # ----- Path A: in-kernel replication over input row blocks --------------
    # Double-buffered per-step working set: 2 * (input tile + output tile).
    # TODO(synk): for inner < 128 (esp. dim == last axis) a dedicated
    # lane-interleave layout would avoid masked vst; this row layout is
    # correct but narrower than ideal there.
    ws_per_row = 2 * inner * itemsize * (1 + repeats)
    rows = _round_down(budget // max(1, ws_per_row), sub)

    if rows >= sub or rows >= M:
        if rows >= M:
            R = M                               # full dim -> always legal
            # Guarantee >= 2 grid steps for non-trivial tensors so the
            # "parallel" axis can shard across v7x's two TensorCores.
            if M >= 2 * sub and M * ws_per_row > (2 << 20):
                half = -(-M // 2)
                R = min(M, _round_up(half, sub))
        else:
            R = rows                            # multiple of `sub`

        out2 = pl.pallas_call(
            functools.partial(_repeat_rows_kernel, repeats=repeats, inner=inner),
            out_shape=jax.ShapeDtypeStruct((M, repeats * inner), x.dtype),
            grid=(pl.cdiv(M, R),),
            in_specs=[pl.BlockSpec((R, inner), lambda i: (i, 0))],
            out_specs=pl.BlockSpec((R, repeats * inner), lambda i: (i, 0)),
            compiler_params=pltpu.CompilerParams(
                dimension_semantics=("parallel",),
                vmem_limit_bytes=vmem_limit,
            ),
        )(x2)
        return out2.reshape(out_shape)

    # ----- Path C: huge `inner` -- column-tiled pure-copy kernel -------------
    # Even a `sub`-row Path-A block busts the budget, so tile the feature axis
    # too.  The replica axis is innermost and the input block index ignores
    # it, so the input fetch is elided across replicas (one HBM read / byte).
    if inner % 128 == 0:
        c_cap = max(128, _round_down(budget // (4 * sub * itemsize), 128))
        C = 128
        c = _round_down(min(c_cap, inner), 128)
        while c >= 128:
            if inner % c == 0:
                C = c
                break
            c -= 128
        nc = inner // C
        rows = _round_down(budget // (4 * C * itemsize), sub)
        R = M if rows >= M else max(sub, rows)

        out2 = pl.pallas_call(
            _copy_kernel,
            out_shape=jax.ShapeDtypeStruct((M, repeats * inner), x.dtype),
            grid=(pl.cdiv(M, R), nc, repeats),
            in_specs=[pl.BlockSpec((R, C), lambda i, j, r: (i, j))],
            out_specs=pl.BlockSpec((R, C), lambda i, j, r: (i, r * nc + j)),
            compiler_params=pltpu.CompilerParams(
                dimension_semantics=("parallel", "arbitrary", "arbitrary"),
                vmem_limit_bytes=vmem_limit,
            ),
        )(x2)
        return out2.reshape(out_shape)

    # TODO(synk): huge non-128-multiple `inner` has no dense Pallas tiling
    # here yet; defer to XLA rather than emit a VMEM-overflowing kernel.
    return jnp.repeat(x, repeats, axis=dim)


if __name__ == "__main__":
    # Module config (from the PyTorch spec): repeats=3 along dim=1.
    repeats, dim = 3, 1

    key = jax.random.PRNGKey(0)
    x = jax.random.normal(key, (2, 4, 16, 16), dtype=jnp.float32)

    out = jax.block_until_ready(repeat_interleave_int(x, repeats, dim))

    # Reference check against jnp.repeat (same semantics as
    # torch.repeat_interleave with an int repeat count).
    ref = jnp.repeat(x, repeats, axis=dim)
    assert out.shape == ref.shape, (out.shape, ref.shape)
    assert jnp.array_equal(out, ref), "mismatch vs reference (repeats=3, dim=1)"

    # Extra small sanity checks on another axis and dtype (still Pallas path).
    for rep, d, dt in ((2, 0, jnp.float32), (3, 1, jnp.bfloat16)):
        xi = x.astype(dt)
        oi = jax.block_until_ready(repeat_interleave_int(xi, rep, d))
        ri = jnp.repeat(xi, rep, axis=d)
        assert oi.shape == ri.shape, (rep, d, dt, oi.shape, ri.shape)
        assert jnp.array_equal(oi, ri), ("mismatch", rep, d, dt)

    print("KERNEL_OK")
</pallas_src>

<mosaic_0001>
module attributes {stable_mosaic.version = 11 : i64} {
  func.func @_repeat_rows_kernel(%arg0: i32, %arg1: memref<8x256xf32, #tpu.memory_space<vmem>>, %arg2: memref<8x768xf32, #tpu.memory_space<vmem>>) attributes {dimension_semantics = [#tpu.dimension_semantics<parallel>], iteration_bounds = array<i64: 1>, scalar_prefetch = 0 : i64, scratch_operands = 0 : i64, tpu.core_type = #tpu.core_type<tc>, window_params = [{transform_indices = @transform_0, window_bounds = array<i64: 8, 256>}, {transform_indices = @transform_1, window_bounds = array<i64: 8, 768>}]} {
    %c0 = arith.constant 0 : index
    %c0_0 = arith.constant 0 : index
    %0 = vector.load %arg1[%c0, %c0_0] : memref<8x256xf32, #tpu.memory_space<vmem>>, vector<8x256xf32>
    %c0_1 = arith.constant 0 : index
    %c0_2 = arith.constant 0 : index
    %1 = vector.load %arg2[%c0_1, %c0_2] : memref<8x768xf32, #tpu.memory_space<vmem>>, vector<8x256xf32>
    tpu.vector_store %arg2[%c0_1, %c0_2], %0 {strides = array<i32>} : memref<8x768xf32, #tpu.memory_space<vmem>>, vector<8x256xf32>,
    %c0_3 = arith.constant 0 : index
    %c256 = arith.constant 256 : index
    %2 = vector.load %arg2[%c0_3, %c256] : memref<8x768xf32, #tpu.memory_space<vmem>>, vector<8x256xf32>
    tpu.vector_store %arg2[%c0_3, %c256], %0 {strides = array<i32>} : memref<8x768xf32, #tpu.memory_space<vmem>>, vector<8x256xf32>,
    %c0_4 = arith.constant 0 : index
    %c512 = arith.constant 512 : index
    %3 = vector.load %arg2[%c0_4, %c512] : memref<8x768xf32, #tpu.memory_space<vmem>>, vector<8x256xf32>
    tpu.vector_store %arg2[%c0_4, %c512], %0 {strides = array<i32>} : memref<8x768xf32, #tpu.memory_space<vmem>>, vector<8x256xf32>,
    return
  }
  func.func @transform_0(%arg0: i32) -> (i32, i32) {
    %c0_i32 = arith.constant 0 : i32
    %c0_i32_0 = arith.constant 0 : i32
    return %arg0, %c0_i32 : i32, i32
  }
  func.func @transform_1(%arg0: i32) -> (i32, i32) {
    %c0_i32 = arith.constant 0 : i32
    %c0_i32_0 = arith.constant 0 : i32
    return %arg0, %c0_i32 : i32, i32
  }
}

</mosaic_0001>

<llo_original>
// kernel: tpu_custom_call.1
$region0: #{tpu_custom_call.1}
  #allocation0 [shape = 'u32[]', space=smem, size = 0x4, offset = 0x4, fixed_abs, tag = 'smem constant byte address 0x4 - core index']
  #allocation1 [shape = 'u32[144,128]{1,0:T(1,128)}', space=vmem, size = 0x12000, scoped, tag = 'internal scratch']
  %s0 = inlined_call_operand.hbm [shape: f32[8,256], index: 0, kind: input, shape index: {}]
  %s1 = inlined_call_operand.hbm [shape: f32[8,768], index: 1, kind: output, shape index: {}]
  %s2 = sld [smem:[#allocation0]]
  $region18: #{tpu_custom_call.1} parent=0
    _
  %s4 = ssub.s32 1, %s2
  %s5 = scalar_select 0, %s4, %s2
  $region1: #{tpu_custom_call.1} parent=0
    #allocation2 [shape = 'u8[8192]{0}', space=vmem, size = 0x2000, scoped, tag = 'input window, operand 0, single buffered']
    #allocation3 [shape = 's32[1]{0}', space=sflag, size = 0x4, scoped, tag = 'scoped memory for tpu_custom_call.1']
    #allocation4 [shape = 's32[1]{0}', space=sflag, size = 0x4, scoped, tag = 'scoped memory for tpu_custom_call.1']
    #allocation5 [shape = 'u8[24576]{0}', space=vmem, size = 0x6000, scoped, tag = 'output window, operand 0, single buffered']
    %6 = vsyncpa [#allocation3], 0
    %7 = vsyncpa [#allocation4], 0
    // Predicated region
    $region2: #{tpu_custom_call.1} parent=1 // pred_check
      _
    $region3: #{tpu_custom_call.1} parent=1 // pred_check_branch
      %9 = sbr.rel (0) target = $region5
    $region4: #{tpu_custom_call.1} parent=1 // pred_region
      %s11 = ssub.s32 256, 256
      %12 = vsyncadd [#allocation3], %s11
      %s14 = sshll.u32 [#allocation2], 4
      %s15 = int_to_ptr.vmem [resolvable:$true] %s14
      %17 = dma.hbm_to_vmem [thread:$0]  %s0, 256, %s15, [#allocation3]
    $region5: #{tpu_custom_call.1} parent=1 // pred_fallthru
      _
    // Predicated region
    $region6: #{tpu_custom_call.1} parent=1 // pred_check
      _
    $region7: #{tpu_custom_call.1} parent=1 // pred_check_branch
      %19 = sbr.rel (0) target = $region9
    $region8: #{tpu_custom_call.1} parent=1 // pred_region
      %20 = dma.done [#allocation3], 256
    $region9: #{tpu_custom_call.1} parent=1 // pred_fallthru
      _
    %v21 = vld [vmem:[#allocation2] sm:$0xff]
    %v22 = vld [vmem:[#allocation2 + $0x8] sm:$0xff]
    %23 = vst [vmem:[#allocation5] sm:$0xff] %v21
    %24 = vst [vmem:[#allocation5 + $0x8] sm:$0xff] %v22
    %25 = vst [vmem:[#allocation5 + $0x10] sm:$0xff] %v21
    %26 = vst [vmem:[#allocation5 + $0x18] sm:$0xff] %v22
    %27 = vst [vmem:[#allocation5 + $0x20] sm:$0xff] %v21
    %28 = vst [vmem:[#allocation5 + $0x28] sm:$0xff] %v22
    // Predicated region
    $region10: #{tpu_custom_call.1} parent=1 // pred_check
      _
    $region11: #{tpu_custom_call.1} parent=1 // pred_check_branch
      %30 = sbr.rel (0) target = $region13
    $region12: #{tpu_custom_call.1} parent=1 // pred_region
      %s32 = ssub.s32 768, 768
      %33 = vsyncadd [#allocation4], %s32
      %s35 = sshll.u32 [#allocation5], 4
      %s36 = int_to_ptr.vmem [resolvable:$true] %s35
      %38 = dma.vmem_to_hbm [thread:$0]  %s36, 768, %s1, [#allocation4]
    $region13: #{tpu_custom_call.1} parent=1 // pred_fallthru
      _
    // Predicated region
    $region14: #{tpu_custom_call.1} parent=1 // pred_check
      _
    $region15: #{tpu_custom_call.1} parent=1 // pred_check_branch
      %40 = sbr.rel (0) target = $region17
    $region16: #{tpu_custom_call.1} parent=1 // pred_region
      %41 = dma.done [#allocation4], 768
    $region17: #{tpu_custom_call.1} parent=1 // pred_fallthru
      _
    %42 = vsyncpa [#allocation3], 1
    %43 = vsyncpa [#allocation4], 1

</llo_original>
